<compile_context>
chip_gen: v5e
topology: v5e:2x2
jax: 0.10.0
libtpu: 0.0.40
codegen_flags: <defaults>
</compile_context>

<pallas_src>
import functools

import jax
import jax.numpy as jnp
import numpy as np
from jax import lax
from jax.experimental import pallas as pl
from jax.experimental.pallas import tpu as pltpu

_EPS = 1e-5
_LANE = 128
# f32 + HIGHEST precision keeps the kernel numerically aligned with the f32
# reference for the self-check.  For production on v6e/v7x cast the dot
# operands to bf16 (keep preferred_element_type=f32); on v5e keep elementwise
# math in f32 either way (no bf16 VPU).
_MATMUL_DTYPE = jnp.float32
_MATMUL_PREC = lax.Precision.HIGHEST


def _round_up(x, m):
    return (x + m - 1) // m * m


# ----------------------------- Pallas kernels -----------------------------


def _dense3x3_kernel(x_ref, w_ref, o_ref, pad_ref):
    """Dense 3x3 conv (padding 1) as 9 MXU matmuls over shifted taps.

    x_ref: (1,H,W,Cp)  w_ref: (3,3,Cp,Cp)  o_ref: (1,H,W,Cp)
    pad_ref: VMEM scratch (H+2, W+2, Cp)
    """
    H, W, Cp = x_ref.shape[1], x_ref.shape[2], x_ref.shape[3]
    zrow = jnp.zeros((1, W + 2, Cp), jnp.float32)
    zcol = jnp.zeros((H + 2, 1, Cp), jnp.float32)
    pad_ref[0:1, :, :] = zrow
    pad_ref[H + 1:H + 2, :, :] = zrow
    pad_ref[:, 0:1, :] = zcol
    pad_ref[:, W + 1:W + 2, :] = zcol
    pad_ref[1:H + 1, 1:W + 1, :] = x_ref[0]

    acc = jnp.zeros((H * W, Cp), jnp.float32)
    for i in range(3):
        for j in range(3):
            tap = pad_ref[i:i + H, j:j + W, :].reshape(H * W, Cp)
            acc = acc + jnp.dot(tap.astype(_MATMUL_DTYPE),
                                w_ref[i, j].astype(_MATMUL_DTYPE),
                                precision=_MATMUL_PREC,
                                preferred_element_type=jnp.float32)
    o_ref[0] = acc.reshape(H, W, Cp)


def _dw_hconv_stats_kernel(x_ref, wv_ref, y_ref, st_ref, pad_ref, *, p):
    """Depthwise (K,1) conv along H (zero pad p) + per-image BN partial sums.

    x_ref: (1,H,W,Cp)  wv_ref: (K,Cp)  y_ref: (1,H,W,Cp)  st_ref: (1,2,Cp)
    pad_ref: VMEM scratch (H+2p, W, Cp)
    """
    H, W, Cp = x_ref.shape[1], x_ref.shape[2], x_ref.shape[3]
    K = wv_ref.shape[0]
    if p > 0:
        z = jnp.zeros((p, W, Cp), jnp.float32)
        pad_ref[0:p, :, :] = z
        pad_ref[p + H:p + H + p, :, :] = z
    pad_ref[p:p + H, :, :] = x_ref[0]

    y = jnp.zeros((H, W, Cp), jnp.float32)
    for k in range(K):
        y = y + pad_ref[k:k + H, :, :] * wv_ref[k:k + 1, :]
    y_ref[0] = y
    s = jnp.sum(y, axis=(0, 1))[None, :]
    ss = jnp.sum(y * y, axis=(0, 1))[None, :]
    st_ref[0] = jnp.concatenate([s, ss], axis=0)


def _bn_prelu_dw_wconv_stats_kernel(y_ref, sc_ref, sh_ref, a_ref, wh_ref,
                                    z_ref, st_ref, pad_ref, *, p):
    """BN1 apply + PReLU + depthwise (1,K) conv along W + BN2 partial sums.

    y_ref: (1,H,W,Cp)  sc/sh/a: (1,Cp)  wh_ref: (K,Cp)
    z_ref: (1,H,W,Cp)  st_ref: (1,2,Cp)  pad_ref: (H, W+2p, Cp)
    """
    H, W, Cp = y_ref.shape[1], y_ref.shape[2], y_ref.shape[3]
    K = wh_ref.shape[0]
    t = y_ref[0] * sc_ref[...] + sh_ref[...]
    t = jnp.where(t >= 0, t, t * a_ref[...])
    if p > 0:
        z0 = jnp.zeros((H, p, Cp), jnp.float32)
        pad_ref[:, 0:p, :] = z0
        pad_ref[:, p + W:p + W + p, :] = z0
    pad_ref[:, p:p + W, :] = t

    z = jnp.zeros((H, W, Cp), jnp.float32)
    for k in range(K):
        z = z + pad_ref[:, k:k + W, :] * wh_ref[k:k + 1, :]
    z_ref[0] = z
    s = jnp.sum(z, axis=(0, 1))[None, :]
    ss = jnp.sum(z * z, axis=(0, 1))[None, :]
    st_ref[0] = jnp.concatenate([s, ss], axis=0)


def _bn_dwdil_pointwise_kernel(z_ref, sc_ref, sh_ref, wd_ref, wp_ref,
                               o_ref, pad_ref, *, d):
    """BN2 apply + depthwise 3x3 dilation-d (pad d) + 1x1 pointwise on MXU.

    z_ref: (1,H,W,Cp)  sc/sh: (1,Cp)  wd_ref: (3,3,Cp)  wp_ref: (Cp,Cp)
    o_ref: (1,H,W,Cp)  pad_ref: (H+2d, W+2d, Cp)
    """
    H, W, Cp = z_ref.shape[1], z_ref.shape[2], z_ref.shape[3]
    t = z_ref[0] * sc_ref[...] + sh_ref[...]

    zr = jnp.zeros((d, W + 2 * d, Cp), jnp.float32)
    zc = jnp.zeros((H + 2 * d, d, Cp), jnp.float32)
    pad_ref[0:d, :, :] = zr
    pad_ref[H + d:H + 2 * d, :, :] = zr
    pad_ref[:, 0:d, :] = zc
    pad_ref[:, W + d:W + 2 * d, :] = zc
    pad_ref[d:d + H, d:d + W, :] = t

    u = jnp.zeros((H, W, Cp), jnp.float32)
    for i in range(3):
        for j in range(3):
            u = u + pad_ref[i * d:i * d + H, j * d:j * d + W, :] * wd_ref[i, j:j + 1, :]

    out = jnp.dot(u.reshape(H * W, Cp).astype(_MATMUL_DTYPE),
                  wp_ref[...].astype(_MATMUL_DTYPE),
                  precision=_MATMUL_PREC,
                  preferred_element_type=jnp.float32)
    o_ref[0] = out.reshape(H, W, Cp)


# ------------------------------- wrappers ---------------------------------


def _compiler_params():
    return pltpu.CompilerParams(
        dimension_semantics=("parallel",),          # batch axis -> both v7x TCs
        vmem_limit_bytes=48 * 1024 * 1024,          # explicit, < v7x 64 MiB phys
    )


def _img_spec(H, W, Cp):
    return pl.BlockSpec((1, H, W, Cp), lambda n: (n, 0, 0, 0))


def _stats_spec(Cp):
    return pl.BlockSpec((1, 2, Cp), lambda n: (n, 0, 0))


def _full_spec(shape):
    return pl.BlockSpec(shape, lambda n, _s=shape: (0,) * len(_s))


def _pad_last(a, pc):
    if pc == 0:
        return a
    return jnp.pad(a, ((0, 0),) * (a.ndim - 1) + ((0, pc),))


def _finalize_bn(stats, gamma, beta, count):
    """Fold global batch stats into per-channel scale/shift (tiny, wrapper-side)."""
    s = jnp.sum(stats[:, 0, :], axis=0)
    ss = jnp.sum(stats[:, 1, :], axis=0)
    mean = s / count
    var = jnp.maximum(ss / count - mean * mean, 0.0)
    scale = gamma * lax.rsqrt(var + _EPS)
    shift = beta - mean * scale
    return scale[None, :], shift[None, :]


def c3block_forward(x_nchw, params, d):
    """Runs the C3block forward on an NCHW float32 input via Pallas."""
    N, C, H, W = x_nchw.shape
    Cp = _round_up(C, _LANE)
    pc = Cp - C

    # TODO(synk): keep the surrounding model in NHWC to drop these two
    # full-tensor layout transposes (pure HBM traffic for a mem-bound block).
    x = jnp.transpose(x_nchw, (0, 2, 3, 1)).astype(jnp.float32)   # -> NHWC
    x = _pad_last(x, pc)                                          # lane-dense C
    cp = _compiler_params()

    if d == 1:
        w = params["w"]                                           # (3,3,C,C)
        if pc:
            w = jnp.pad(w, ((0, 0), (0, 0), (0, pc), (0, pc)))
        out = pl.pallas_call(
            _dense3x3_kernel,
            grid=(N,),
            in_specs=[_img_spec(H, W, Cp), _full_spec((3, 3, Cp, Cp))],
            out_specs=_img_spec(H, W, Cp),
            out_shape=jax.ShapeDtypeStruct((N, H, W, Cp), jnp.float32),
            scratch_shapes=[pltpu.VMEM((H + 2, W + 2, Cp), jnp.float32)],
            compiler_params=cp,
        )(x, w)
    else:
        p = d - 1
        K = 2 * d - 1
        wv = _pad_last(params["wv"], pc)                          # (K, Cp)
        wh = _pad_last(params["wh"], pc)                          # (K, Cp)
        wd = _pad_last(params["wd"], pc)                          # (3,3,Cp)
        wp = params["wp"]                                         # (C, C)
        if pc:
            wp = jnp.pad(wp, ((0, pc), (0, pc)))                  # (Cp, Cp)
        g1, b1 = _pad_last(params["g1"], pc), _pad_last(params["b1"], pc)
        g2, b2 = _pad_last(params["g2"], pc), _pad_last(params["b2"], pc)
        alpha = _pad_last(params["alpha"], pc)[None, :]           # (1, Cp)
        count = N * H * W

        # pass A: depthwise (K,1) conv along H + BN1 partial stats
        y1, st1 = pl.pallas_call(
            functools.partial(_dw_hconv_stats_kernel, p=p),
            grid=(N,),
            in_specs=[_img_spec(H, W, Cp), _full_spec((K, Cp))],
            out_specs=[_img_spec(H, W, Cp), _stats_spec(Cp)],
            out_shape=[jax.ShapeDtypeStruct((N, H, W, Cp), jnp.float32),
                       jax.ShapeDtypeStruct((N, 2, Cp), jnp.float32)],
            scratch_shapes=[pltpu.VMEM((H + 2 * p, W, Cp), jnp.float32)],
            compiler_params=cp,
        )(x, wv)
        sc1, sh1 = _finalize_bn(st1, g1, b1, count)

        # pass B: BN1 + PReLU + depthwise (1,K) conv along W + BN2 stats
        z, st2 = pl.pallas_call(
            functools.partial(_bn_prelu_dw_wconv_stats_kernel, p=p),
            grid=(N,),
            in_specs=[_img_spec(H, W, Cp), _full_spec((1, Cp)),
                      _full_spec((1, Cp)), _full_spec((1, Cp)),
                      _full_spec((K, Cp))],
            out_specs=[_img_spec(H, W, Cp), _stats_spec(Cp)],
            out_shape=[jax.ShapeDtypeStruct((N, H, W, Cp), jnp.float32),
                       jax.ShapeDtypeStruct((N, 2, Cp), jnp.float32)],
            scratch_shapes=[pltpu.VMEM((H, W + 2 * p, Cp), jnp.float32)],
            compiler_params=cp,
        )(y1, sc1, sh1, alpha, wh)
        sc2, sh2 = _finalize_bn(st2, g2, b2, count)

        # pass C: BN2 + depthwise 3x3 dilated-d + 1x1 pointwise (MXU)
        out = pl.pallas_call(
            functools.partial(_bn_dwdil_pointwise_kernel, d=d),
            grid=(N,),
            in_specs=[_img_spec(H, W, Cp), _full_spec((1, Cp)),
                      _full_spec((1, Cp)), _full_spec((3, 3, Cp)),
                      _full_spec((Cp, Cp))],
            out_specs=_img_spec(H, W, Cp),
            out_shape=jax.ShapeDtypeStruct((N, H, W, Cp), jnp.float32),
            scratch_shapes=[pltpu.VMEM((H + 2 * d, W + 2 * d, Cp), jnp.float32)],
            compiler_params=cp,
        )(z, sc2, sh2, wd, wp)

    out = out[..., :C]
    return jnp.transpose(out, (0, 3, 1, 2))                      # -> NCHW


def init_params(key, C, d):
    """Deterministic synthetic parameters; torch-layout copies kept for the ref."""
    if d == 1:
        w_t = 0.3 * jax.random.normal(key, (C, C, 3, 3), jnp.float32)   # OIHW
        return {"w_torch": w_t, "w": jnp.transpose(w_t, (2, 3, 1, 0))}  # (3,3,I,O)
    K = 2 * d - 1
    ks = jax.random.split(key, 9)
    wv_t = 0.4 * jax.random.normal(ks[0], (C, 1, K, 1), jnp.float32)
    wh_t = 0.4 * jax.random.normal(ks[1], (C, 1, 1, K), jnp.float32)
    wd_t = 0.4 * jax.random.normal(ks[2], (C, 1, 3, 3), jnp.float32)
    wp_t = 0.4 * jax.random.normal(ks[3], (C, C, 1, 1), jnp.float32)
    g1 = 1.0 + 0.1 * jax.random.normal(ks[4], (C,), jnp.float32)
    b1 = 0.1 * jax.random.normal(ks[5], (C,), jnp.float32)
    alpha = 0.25 + 0.05 * jax.random.normal(ks[6], (C,), jnp.float32)
    g2 = 1.0 + 0.1 * jax.random.normal(ks[7], (C,), jnp.float32)
    b2 = 0.1 * jax.random.normal(ks[8], (C,), jnp.float32)
    return {
        "wv_torch": wv_t, "wh_torch": wh_t, "wd_torch": wd_t, "wp_torch": wp_t,
        "wv": jnp.transpose(wv_t[:, 0, :, 0], (1, 0)),      # (K, C)
        "wh": jnp.transpose(wh_t[:, 0, 0, :], (1, 0)),      # (K, C)
        "wd": jnp.transpose(wd_t[:, 0, :, :], (1, 2, 0)),   # (3, 3, C)
        "wp": jnp.transpose(wp_t[:, :, 0, 0], (1, 0)),      # (Cin, Cout)
        "g1": g1, "b1": b1, "alpha": alpha, "g2": g2, "b2": b2,
    }


# -------------------------- pure-JAX reference -----------------------------


def _conv(x, w, padding, dilation=(1, 1), groups=1):
    return lax.conv_general_dilated(
        x, w, window_strides=(1, 1), padding=padding, rhs_dilation=dilation,
        dimension_numbers=("NCHW", "OIHW", "NCHW"), feature_group_count=groups)


def _bn_train(x, g, b):
    m = jnp.mean(x, axis=(0, 2, 3), keepdims=True)
    v = jnp.mean((x - m) ** 2, axis=(0, 2, 3), keepdims=True)
    return (x - m) * lax.rsqrt(v + _EPS) * g[None, :, None, None] \
        + b[None, :, None, None]


def c3block_reference(x, params, d):
    if d == 1:
        return _conv(x, params["w_torch"], [(1, 1), (1, 1)])
    C = x.shape[1]
    p = d - 1
    y = _conv(x, params["wv_torch"], [(p, p), (0, 0)], groups=C)
    y = _bn_train(y, params["g1"], params["b1"])
    a = params["alpha"][None, :, None, None]
    y = jnp.where(y >= 0, y, a * y)
    z = _conv(y, params["wh_torch"], [(0, 0), (p, p)], groups=C)
    z = _bn_train(z, params["g2"], params["b2"])
    u = _conv(z, params["wd_torch"], [(d, d), (d, d)], dilation=(d, d), groups=C)
    return _conv(u, params["wp_torch"], [(0, 0), (0, 0)])


# ---------------------------------- main -----------------------------------


if __name__ == "__main__":
    key = jax.random.PRNGKey(0)
    kx, kp1, kp2 = jax.random.split(key, 3)
    N, C, H, W = 2, 4, 16, 16
    x = jax.random.normal(kx, (N, C, H, W), jnp.float32)

    # d > 1 branch: depthwise / BN / PReLU / dilated / pointwise pipeline.
    d = 2
    params_d = init_params(kp1, C, d)
    out_d = jax.block_until_ready(c3block_forward(x, params_d, d))
    ref_d = c3block_reference(x, params_d, d)
    np.testing.assert_allclose(np.asarray(out_d), np.asarray(ref_d),
                               rtol=1.5e-3, atol=2e-4)

    # d == 1 branch: plain dense 3x3 conv.
    params_1 = init_params(kp2, C, 1)
    out_1 = jax.block_until_ready(c3block_forward(x, params_1, 1))
    ref_1 = c3block_reference(x, params_1, 1)
    np.testing.assert_allclose(np.asarray(out_1), np.asarray(ref_1),
                               rtol=1.5e-3, atol=2e-4)

    print("KERNEL_OK")
</pallas_src>

<mosaic_0001>
module attributes {stable_mosaic.version = 11 : i64} {
  func.func @_dw_hconv_stats_kernel(%arg0: i32, %arg1: memref<1x16x16x128xf32, #tpu.memory_space<vmem>>, %arg2: memref<3x128xf32, #tpu.memory_space<vmem>>, %arg3: memref<1x16x16x128xf32, #tpu.memory_space<vmem>>, %arg4: memref<1x2x128xf32, #tpu.memory_space<vmem>>, %arg5: memref<18x16x128xf32, #tpu.memory_space<vmem>>) attributes {dimension_semantics = [#tpu.dimension_semantics<parallel>], iteration_bounds = array<i64: 2>, scalar_prefetch = 0 : i64, scratch_operands = 1 : i64, tpu.core_type = #tpu.core_type<tc>, window_params = [{transform_indices = @transform_0, window_bounds = array<i64: 1, 16, 16, 128>}, {pipeline_mode = #tpu.pipeline_mode<synchronous>, transform_indices = @transform_1, window_bounds = array<i64: 3, 128>}, {transform_indices = @transform_2, window_bounds = array<i64: 1, 16, 16, 128>}, {transform_indices = @transform_3, window_bounds = array<i64: 1, 2, 128>}]} {
    %cst = arith.constant 0.000000e+00 : f32
    %0 = vector.broadcast %cst : f32 to vector<1x16x128xf32>
    %c0 = arith.constant 0 : index
    %c0_0 = arith.constant 0 : index
    %c0_1 = arith.constant 0 : index
    %1 = vector.load %arg5[%c0, %c0_0, %c0_1] : memref<18x16x128xf32, #tpu.memory_space<vmem>>, vector<1x16x128xf32>
    tpu.vector_store %arg5[%c0, %c0_0, %c0_1], %0 {strides = array<i32>} : memref<18x16x128xf32, #tpu.memory_space<vmem>>, vector<1x16x128xf32>,
    %c17 = arith.constant 17 : index
    %c0_2 = arith.constant 0 : index
    %c0_3 = arith.constant 0 : index
    %2 = vector.load %arg5[%c17, %c0_2, %c0_3] : memref<18x16x128xf32, #tpu.memory_space<vmem>>, vector<1x16x128xf32>
    tpu.vector_store %arg5[%c17, %c0_2, %c0_3], %0 {strides = array<i32>} : memref<18x16x128xf32, #tpu.memory_space<vmem>>, vector<1x16x128xf32>,
    %c0_4 = arith.constant 0 : index
    %c0_5 = arith.constant 0 : index
    %c0_6 = arith.constant 0 : index
    %c0_7 = arith.constant 0 : index
    %3 = vector.load %arg1[%c0_4, %c0_5, %c0_6, %c0_7] : memref<1x16x16x128xf32, #tpu.memory_space<vmem>>, vector<1x16x16x128xf32>
    %4 = vector.shape_cast %3 : vector<1x16x16x128xf32> to vector<16x16x128xf32>
    %c1 = arith.constant 1 : index
    %c0_8 = arith.constant 0 : index
    %c0_9 = arith.constant 0 : index
    %5 = vector.load %arg5[%c1, %c0_8, %c0_9] : memref<18x16x128xf32, #tpu.memory_space<vmem>>, vector<16x16x128xf32>
    tpu.vector_store %arg5[%c1, %c0_8, %c0_9], %4 {strides = array<i32>} : memref<18x16x128xf32, #tpu.memory_space<vmem>>, vector<16x16x128xf32>,
    %cst_10 = arith.constant 0.000000e+00 : f32
    %6 = vector.broadcast %cst_10 : f32 to vector<16x16x128xf32>
    %c0_11 = arith.constant 0 : index
    %c0_12 = arith.constant 0 : index
    %c0_13 = arith.constant 0 : index
    %7 = vector.load %arg5[%c0_11, %c0_12, %c0_13] : memref<18x16x128xf32, #tpu.memory_space<vmem>>, vector<16x16x128xf32>
    %c0_14 = arith.constant 0 : index
    %c0_15 = arith.constant 0 : index
    %8 = vector.load %arg2[%c0_14, %c0_15] : memref<3x128xf32, #tpu.memory_space<vmem>>, vector<1x128xf32>
    %9 = vector.shape_cast %8 : vector<1x128xf32> to vector<1x1x128xf32>
    %10 = vector.broadcast %9 : vector<1x1x128xf32> to vector<16x16x128xf32>
    %11 = arith.mulf %7, %10 : vector<16x16x128xf32>
    %12 = arith.addf %6, %11 : vector<16x16x128xf32>
    %c1_16 = arith.constant 1 : index
    %c0_17 = arith.constant 0 : index
    %c0_18 = arith.constant 0 : index
    %13 = vector.load %arg5[%c1_16, %c0_17, %c0_18] : memref<18x16x128xf32, #tpu.memory_space<vmem>>, vector<16x16x128xf32>
    %c1_19 = arith.constant 1 : index
    %c0_20 = arith.constant 0 : index
    %14 = vector.load %arg2[%c1_19, %c0_20] : memref<3x128xf32, #tpu.memory_space<vmem>>, vector<1x128xf32>
    %15 = vector.shape_cast %14 : vector<1x128xf32> to vector<1x1x128xf32>
    %16 = vector.broadcast %15 : vector<1x1x128xf32> to vector<16x16x128xf32>
    %17 = arith.mulf %13, %16 : vector<16x16x128xf32>
    %18 = arith.addf %12, %17 : vector<16x16x128xf32>
    %c2 = arith.constant 2 : index
    %c0_21 = arith.constant 0 : index
    %c0_22 = arith.constant 0 : index
    %19 = vector.load %arg5[%c2, %c0_21, %c0_22] : memref<18x16x128xf32, #tpu.memory_space<vmem>>, vector<16x16x128xf32>
    %c2_23 = arith.constant 2 : index
    %c0_24 = arith.constant 0 : index
    %20 = vector.load %arg2[%c2_23, %c0_24] : memref<3x128xf32, #tpu.memory_space<vmem>>, vector<1x128xf32>
    %21 = vector.shape_cast %20 : vector<1x128xf32> to vector<1x1x128xf32>
    %22 = vector.broadcast %21 : vector<1x1x128xf32> to vector<16x16x128xf32>
    %23 = arith.mulf %19, %22 : vector<16x16x128xf32>
    %24 = arith.addf %18, %23 : vector<16x16x128xf32>
    %c0_25 = arith.constant 0 : index
    %c0_26 = arith.constant 0 : index
    %c0_27 = arith.constant 0 : index
    %c0_28 = arith.constant 0 : index
    %25 = vector.load %arg3[%c0_25, %c0_26, %c0_27, %c0_28] : memref<1x16x16x128xf32, #tpu.memory_space<vmem>>, vector<1x16x16x128xf32>
    %26 = vector.shape_cast %25 : vector<1x16x16x128xf32> to vector<16x16x128xf32>
    %27 = vector.shape_cast %24 : vector<16x16x128xf32> to vector<1x16x16x128xf32>
    tpu.vector_store %arg3[%c0_25, %c0_26, %c0_27, %c0_28], %27 {strides = array<i32>} : memref<1x16x16x128xf32, #tpu.memory_space<vmem>>, vector<1x16x16x128xf32>,
    %cst_29 = arith.constant dense<0.000000e+00> : vector<128xf32>
    %28 = vector.multi_reduction <add>, %24, %cst_29 [0, 1] : vector<16x16x128xf32> to vector<128xf32>
    %29 = vector.shape_cast %28 : vector<128xf32> to vector<1x128xf32>
    %30 = arith.mulf %24, %24 : vector<16x16x128xf32>
    %cst_30 = arith.constant dense<0.000000e+00> : vector<128xf32>
    %31 = vector.multi_reduction <add>, %30, %cst_30 [0, 1] : vector<16x16x128xf32> to vector<128xf32>
    %32 = vector.shape_cast %31 : vector<128xf32> to vector<1x128xf32>
    %33 = tpu.concatenate %29, %32 in 0 : vector<1x128xf32>, vector<1x128xf32> -> vector<2x128xf32>
    %c0_31 = arith.constant 0 : index
    %c0_32 = arith.constant 0 : index
    %c0_33 = arith.constant 0 : index
    %34 = vector.load %arg4[%c0_31, %c0_32, %c0_33] : memref<1x2x128xf32, #tpu.memory_space<vmem>>, vector<1x2x128xf32>
    %35 = vector.shape_cast %34 : vector<1x2x128xf32> to vector<2x128xf32>
    %36 = vector.shape_cast %33 : vector<2x128xf32> to vector<1x2x128xf32>
    tpu.vector_store %arg4[%c0_31, %c0_32, %c0_33], %36 {strides = array<i32>} : memref<1x2x128xf32, #tpu.memory_space<vmem>>, vector<1x2x128xf32>,
    return
  }
  func.func @transform_0(%arg0: i32) -> (i32, i32, i32, i32) {
    %c0_i32 = arith.constant 0 : i32
    %c0_i32_0 = arith.constant 0 : i32
    %c0_i32_1 = arith.constant 0 : i32
    %c0_i32_2 = arith.constant 0 : i32
    return %arg0, %c0_i32, %c0_i32_0, %c0_i32_1 : i32, i32, i32, i32
  }
  func.func @transform_1(%arg0: i32) -> (i32, i32) {
    %c0_i32 = arith.constant 0 : i32
    %c0_i32_0 = arith.constant 0 : i32
    %c0_i32_1 = arith.constant 0 : i32
    return %c0_i32, %c0_i32_0 : i32, i32
  }
  func.func @transform_2(%arg0: i32) -> (i32, i32, i32, i32) {
    %c0_i32 = arith.constant 0 : i32
    %c0_i32_0 = arith.constant 0 : i32
    %c0_i32_1 = arith.constant 0 : i32
    %c0_i32_2 = arith.constant 0 : i32
    return %arg0, %c0_i32, %c0_i32_0, %c0_i32_1 : i32, i32, i32, i32
  }
  func.func @transform_3(%arg0: i32) -> (i32, i32, i32) {
    %c0_i32 = arith.constant 0 : i32
    %c0_i32_0 = arith.constant 0 : i32
    %c0_i32_1 = arith.constant 0 : i32
    return %arg0, %c0_i32, %c0_i32_0 : i32, i32, i32
  }
}

</mosaic_0001>

<llo_original>
// kernel: tpu_custom_call.1
$region0: #{tpu_custom_call.1}
  #allocation0 [shape = 'u32[]', space=smem, size = 0x4, offset = 0x4, fixed_abs, tag = 'smem constant byte address 0x4 - core index']
  #allocation1 [shape = 'u32[72,128]{1,0:T(1,128)}', space=vmem, size = 0x9000, scoped, tag = 'internal scratch']
  #allocation2 [shape = 'f32[18,16,128]{2,1,0:T(8,128)}', space=vmem, size = 0x24000, scoped, tag = 'scratch operand']
  %s0 = inlined_call_operand.hbm [shape: f32[2,16,16,128], index: 0, kind: input, shape index: {}]
  %s1 = inlined_call_operand.hbm [shape: f32[3,128], index: 1, kind: input, shape index: {}]
  %s2 = inlined_call_operand.hbm [shape: f32[2,16,16,128], index: 2, kind: output, shape index: {0}]
  %s3 = inlined_call_operand.hbm [shape: f32[2,2,128], index: 3, kind: output, shape index: {1}]
  %4 = xla_tuple %s2, %s3
  %s5 = sld [smem:[#allocation0]]
  $region57: #{tpu_custom_call.1} parent=0
    _
  %s7 = ssub.s32 1, %s5
  %s8 = scalar_select 0, %s7, %s5
  $region1: #{tpu_custom_call.1} parent=0
    #allocation3 [shape = 'u8[262144]{0}', space=vmem, size = 0x40000, scoped, tag = 'input window, operand 0']
    #allocation4 [shape = 's32[2]{0}', space=sflag, size = 0x8, scoped, tag = 'scoped memory for tpu_custom_call.1']
    #allocation5 [shape = 's32[2]{0}', space=sflag, size = 0x8, scoped, tag = 'scoped memory for tpu_custom_call.1']
    #allocation6 [shape = 'u8[2048]{0}', space=vmem, size = 0x800, scoped, tag = 'input window, operand 1, single buffered']
    #allocation7 [shape = 's32[1]{0}', space=sflag, size = 0x4, scoped, tag = 'scoped memory for tpu_custom_call.1']
    #allocation8 [shape = 'u8[262144]{0}', space=vmem, size = 0x40000, scoped, tag = 'output window, operand 0']
    #allocation9 [shape = 'u8[2048]{0}', space=vmem, size = 0x800, scoped, tag = 'output window, operand 1']
    #allocation10 [shape = 's32[2]{0}', space=sflag, size = 0x8, scoped, tag = 'scoped memory for tpu_custom_call.1']
    %9 = vsyncpa [#allocation4], 0
    %s10 = scalar_lea.sflag [#allocation4], 1
    %11 = vsyncpa %s10, 0
    %12 = vsyncpa [#allocation7], 0
    %13 = vsyncpa [#allocation5], 0
    %s14 = scalar_lea.sflag [#allocation5], 1
    %15 = vsyncpa %s14, 0
    %16 = vsyncpa [#allocation10], 0
    %s17 = scalar_lea.sflag [#allocation10], 1
    %18 = vsyncpa %s17, 0
    loop: start=0, step=1, limit=4
    $region2: #{tpu_custom_call.1} parent=1 // loop_pre_header
      _
    $region3: #{tpu_custom_call.1} parent=1 // loop_header
      %s20 = sphi 0, %s24
      %p21 = scmp.ge.s32.totalorder %s20, 4
      %s30 = sphi 0, %s32
      %s33 = sphi 0, %s30
      %s34 = sphi 0, %s33
      %s50 = sphi 0, %s34
      %s54 = sphi 0, %s54
      %s56 = sphi 0, %s54
      %s57 = sphi 0, %s56
      %s71 = sphi 0, %s57
      %s77 = sphi 0, %s79
      %s80 = sphi 0, %s77
      %s81 = sphi 0, %s80
      %s97 = sphi 0, %s81
      %s103 = sphi 0, %s105
      %s106 = sphi 0, %s103
      %s107 = sphi 0, %s106
      %s123 = sphi 0, %s107
    $region4: #{tpu_custom_call.1} parent=1 // loop_header_branch
      %23 = sbr.rel (%p21) target = $region8
    $region5: #{tpu_custom_call.1} parent=1 // loop_body
      %s25 = ssub.s32 %s20, 1
      %s26 = ssub.s32 %s20, 2
      %s27 = sadd.s32 %s20, 1
      %s28 = ssub.s32 %s20, %s27
      %p29 = scmp.eq.s32.totalorder %s28, 0
      %s31 = sadd.s32 %s30, 1
      %s32 = scalar_select %p29, %s30, %s31
      %p35 = pneg %p29
      %p36 = scmp.eq.s32.totalorder %s20, 1
      %p37 = por %p35, %p36
      %p38 = scmp.ne.s32.totalorder %s30, %s33
      %p39 = scmp.eq.s32.totalorder %s20, 0
      %p40 = por %p38, %p39
      %p41 = scmp.ne.s32.totalorder %s30, %s33
      %p42 = scmp.eq.s32.totalorder %s25, 1
      %p43 = por %p41, %p42
      %p44 = scmp.ne.s32.totalorder %s33, %s34
      %p45 = scmp.eq.s32.totalorder %s25, 0
      %p46 = por %p44, %p45
      %p47 = scmp.ne.s32.totalorder %s33, %s34
      %p48 = scmp.eq.s32.totalorder %s26, 1
      %p49 = por %p47, %p48
      %p51 = scmp.ne.s32.totalorder %s34, %s50
      %p52 = scmp.eq.s32.totalorder %s26, 0
      %p53 = por %p51, %p52
      %s55 = sadd.s32 %s54, 1
      %p58 = scmp.eq.s32.totalorder %s20, 1
      %p59 = scmp.ne.s32.totalorder %s54, %s56
      %p60 = scmp.eq.s32.totalorder %s20, 0
      %p61 = por %p59, %p60
      %p62 = scmp.ne.s32.totalorder %s54, %s56
      %p63 = scmp.eq.s32.totalorder %s25, 1
      %p64 = por %p62, %p63
      %p65 = scmp.ne.s32.totalorder %s56, %s57
      %p66 = scmp.eq.s32.totalorder %s25, 0
      %p67 = por %p65, %p66
      %p68 = scmp.ne.s32.totalorder %s56, %s57
      %p69 = scmp.eq.s32.totalorder %s26, 1
      %p70 = por %p68, %p69
      %p72 = scmp.ne.s32.totalorder %s57, %s71
      %p73 = scmp.eq.s32.totalorder %s26, 0
      %p74 = por %p72, %p73
      %s75 = ssub.s32 %s20, %s27
      %p76 = scmp.eq.s32.totalorder %s75, 0
      %s78 = sadd.s32 %s77, 1
      %s79 = scalar_select %p76, %s77, %s78
      %p82 = pneg %p76
      %p83 = scmp.eq.s32.totalorder %s20, 1
      %p84 = por %p82, %p83
      %p85 = scmp.ne.s32.totalorder %s77, %s80
      %p86 = scmp.eq.s32.totalorder %s20, 0
      %p87 = por %p85, %p86
      %p88 = scmp.ne.s32.totalorder %s77, %s80
      %p89 = scmp.eq.s32.totalorder %s25, 1
      %p90 = por %p88, %p89
      %p91 = scmp.ne.s32.totalorder %s80, %s81
      %p92 = scmp.eq.s32.totalorder %s25, 0
      %p93 = por %p91, %p92
      %p94 = scmp.ne.s32.totalorder %s80, %s81
      %p95 = scmp.eq.s32.totalorder %s26, 1
      %p96 = por %p94, %p95
      %p98 = scmp.ne.s32.totalorder %s81, %s97
      %p99 = scmp.eq.s32.totalorder %s26, 0
      %p100 = por %p98, %p99
      %s101 = ssub.s32 %s20, %s27
      %p102 = scmp.eq.s32.totalorder %s101, 0
      %s104 = sadd.s32 %s103, 1
      %s105 = scalar_select %p102, %s103, %s104
      %p108 = pneg %p102
      %p109 = scmp.eq.s32.totalorder %s20, 1
      %p110 = por %p108, %p109
      %p111 = scmp.ne.s32.totalorder %s103, %s106
      %p112 = scmp.eq.s32.totalorder %s20, 0
      %p113 = por %p111, %p112
      %p114 = scmp.ne.s32.totalorder %s103, %s106
      %p115 = scmp.eq.s32.totalorder %s25, 1
      %p116 = por %p114, %p115
      %p117 = scmp.ne.s32.totalorder %s106, %s107
      %p118 = scmp.eq.s32.totalorder %s25, 0
      %p119 = por %p117, %p118
      %p120 = scmp.ne.s32.totalorder %s106, %s107
      %p121 = scmp.eq.s32.totalorder %s26, 1
      %p122 = por %p120, %p121
      %p124 = scmp.ne.s32.totalorder %s107, %s123
      %p125 = scmp.eq.s32.totalorder %s26, 0
      %p126 = por %p124, %p125
      %p127 = scmp.le.s32.totalorder 1, %s20
      %p128 = scmp.lt.s32.totalorder %s20, 3
      %p129 = pnand %p127, %p128
      %p130 = pneg %p129
      // Predicated region
      $region9: #{tpu_custom_call.1} parent=5 // pred_check
        _
      $region10: #{tpu_custom_call.1} parent=5 // pred_check_branch
        %132 = sbr.rel (%p129) target = $region12
      $region11: #{tpu_custom_call.1} parent=5 // pred_region
        %s133 = ssub.s32 %s20, 1
        // Predicated region
        $region13: #{tpu_custom_call.1} parent=11 // pred_check
          %p134 = pneg %p67
        $region14: #{tpu_custom_call.1} parent=11 // pred_check_branch
          %136 = sbr.rel (%p134) target = $region16
        $region15: #{tpu_custom_call.1} parent=11 // pred_region
          %138 = vsyncadd [#allocation7], 0
          %s140 = sshll.u32 %s1, 4
          %s141 = int_to_ptr.hbm [resolvable:$true] %s140
          %s142 = sshll.u32 [#allocation6], 4
          %s143 = int_to_ptr.vmem [resolvable:$true] %s142
          %145 = dma.hbm_to_vmem [thread:$0]  %s141, 64, %s143, [#allocation7]
        $region16: #{tpu_custom_call.1} parent=11 // pred_fallthru
          _
      $region12: #{tpu_custom_call.1} parent=5 // pred_fallthru
        _
      %p146 = scmp.lt.s32.totalorder %s20, 2
      // Predicated region
      $region17: #{tpu_custom_call.1} parent=5 // pred_check
        %p147 = pneg %p146
      $region18: #{tpu_custom_call.1} parent=5 // pred_check_branch
        %149 = sbr.rel (%p147) target = $region20
      $region19: #{tpu_custom_call.1} parent=5 // pred_region
        // Predicated region
        $region21: #{tpu_custom_call.1} parent=19 // pred_check
          %p150 = pneg %p40
        $region22: #{tpu_custom_call.1} parent=19 // pred_check_branch
          %152 = sbr.rel (%p150) target = $region24
        $region23: #{tpu_custom_call.1} parent=19 // pred_region
          %s153 = sand.u32 %s30, 1
          %s154 = scalar_lea.sflag [#allocation4], %s153
          %s155 = sand.u32 %s30, 1
          %s156 = smul.addr %s155, 256
          %s157 = scalar_lea.vmem [#allocation3], %s156
          %159 = vsyncadd %s154, 0
          %s160 = smul.addr %s20, 32
          %s161 = smul.addr %s160, 8
          %s162 = scalar_lea.hbm %s0, %s161
          %s163 = sshll.u32 %s162, 4
          %s164 = int_to_ptr.hbm [resolvable:$true] %s163
          %s165 = sshll.u32 %s157, 4
          %s166 = int_to_ptr.vmem [resolvable:$true] %s165
          %171 = dma.hbm_to_vmem [thread:$0]  %s164, 4096, %s166, %s154, 128, 128, 8
        $region24: #{tpu_custom_call.1} parent=19 // pred_fallthru
          _
      $region20: #{tpu_custom_call.1} parent=5 // pred_fallthru
        _
      %p172 = scmp.le.s32.totalorder 1, %s20
      %p173 = scmp.lt.s32.totalorder %s20, 3
      %p174 = pnand %p172, %p173
      %p175 = pneg %p174
      // Predicated region
      $region25: #{tpu_custom_call.1} parent=5 // pred_check
        _
      $region26: #{tpu_custom_call.1} parent=5 // pred_check_branch
        %177 = sbr.rel (%p174) target = $region28
      $region27: #{tpu_custom_call.1} parent=5 // pred_region
        %s178 = ssub.s32 %s20, 1
        %s179 = sand.u32 %s33, 1
        %s180 = scalar_lea.sflag [#allocation4], %s179
        %s181 = sand.u32 %s33, 1
        %s182 = smul.addr %s181, 256
        %s183 = scalar_lea.vmem [#allocation3], %s182
        // Predicated region
        $region29: #{tpu_custom_call.1} parent=27 // pred_check
          %p184 = pneg %p46
        $region30: #{tpu_custom_call.1} parent=27 // pred_check_branch
          %186 = sbr.rel (%p184) target = $region32
        $region31: #{tpu_custom_call.1} parent=27 // pred_region
          %188 = dma.done %s180, 4096
        $region32: #{tpu_custom_call.1} parent=27 // pred_fallthru
          _
        // Predicated region
        $region33: #{tpu_custom_call.1} parent=27 // pred_check
          %p189 = pneg %p67
        $region34: #{tpu_custom_call.1} parent=27 // pred_check_branch
          %191 = sbr.rel (%p189) target = $region36
        $region35: #{tpu_custom_call.1} parent=27 // pred_region
          %193 = dma.done [#allocation7], 64
        $region36: #{tpu_custom_call.1} parent=27 // pred_fallthru
          _
        %s194 = sand.u32 %s33, 1
        %s195 = scalar_lea.sflag [#allocation4], %s194
        %s196 = sand.u32 %s33, 1
        %s197 = smul.addr %s196, 256
        %s198 = scalar_lea.vmem [#allocation3], %s197
        %p199 = pneg %p46
        %p200 = pneg %p43
        %p201 = pneg %p67
        %p202 = pneg %p64
        %p203 = pneg %p93
        %p204 = pneg %p90
        %s205 = sand.u32 %s80, 1
        %s206 = scalar_lea.sflag [#allocation5], %s205
        %s207 = sand.u32 %s80, 1
        %s208 = smul.addr %s207, 256
        %s209 = scalar_lea.vmem [#allocation8], %s208
        %p210 = pneg %p119
        %p211 = pneg %p116
        %s212 = sand.u32 %s106, 1
        %s213 = scalar_lea.sflag [#allocation10], %s212
        %s214 = sand.u32 %s106, 1
        %s215 = smul.addr %s214, 2
        %s216 = scalar_lea.vmem [#allocation9], %s215
        %217 = vst [vmem:[#allocation2] sm:$0xff] 0.0
        %218 = vst [vmem:[#allocation2 + $0x8] sm:$0xff] 0.0
        %s219 = scalar_lea.vmem [#allocation2], 272
        %220 = vst [vmem:[%s219] sm:$0xff] 0.0
        %221 = vst [vmem:[%s219 + $0x8] sm:$0xff] 0.0
        %v222 = vld [vmem:[%s183] sm:$0xff]
        %v223 = vld [vmem:[%s183 + $0x8] sm:$0xff]
        %v224 = vld [vmem:[%s183 + $0x10] sm:$0xff]
        %v225 = vld [vmem:[%s183 + $0x18] sm:$0xff]
        %v226 = vld [vmem:[%s183 + $0x20] sm:$0xff]
        %v227 = vld [vmem:[%s183 + $0x28] sm:$0xff]
        %v228 = vld [vmem:[%s183 + $0x30] sm:$0xff]
        %v229 = vld [vmem:[%s183 + $0x38] sm:$0xff]
        %v230 = vld [vmem:[%s183 + $0x40] sm:$0xff]
        %v231 = vld [vmem:[%s183 + $0x48] sm:$0xff]
        %v232 = vld [vmem:[%s183 + $0x50] sm:$0xff]
        %v233 = vld [vmem:[%s183 + $0x58] sm:$0xff]
        %v234 = vld [vmem:[%s183 + $0x60] sm:$0xff]
        %v235 = vld [vmem:[%s183 + $0x68] sm:$0xff]
        %v236 = vld [vmem:[%s183 + $0x70] sm:$0xff]
        %v237 = vld [vmem:[%s183 + $0x78] sm:$0xff]
        %v238 = vld [vmem:[%s183 + $0x80] sm:$0xff]
        %v239 = vld [vmem:[%s183 + $0x88] sm:$0xff]
        %v240 = vld [vmem:[%s183 + $0x90] sm:$0xff]
        %v241 = vld [vmem:[%s183 + $0x98] sm:$0xff]
        %v242 = vld [vmem:[%s183 + $0xa0] sm:$0xff]
        %v243 = vld [vmem:[%s183 + $0xa8] sm:$0xff]
        %v244 = vld [vmem:[%s183 + $0xb0] sm:$0xff]
        %v245 = vld [vmem:[%s183 + $0xb8] sm:$0xff]
        %v246 = vld [vmem:[%s183 + $0xc0] sm:$0xff]
        %v247 = vld [vmem:[%s183 + $0xc8] sm:$0xff]
        %v248 = vld [vmem:[%s183 + $0xd0] sm:$0xff]
        %v249 = vld [vmem:[%s183 + $0xd8] sm:$0xff]
        %v250 = vld [vmem:[%s183 + $0xe0] sm:$0xff]
        %v251 = vld [vmem:[%s183 + $0xe8] sm:$0xff]
        %v252 = vld [vmem:[%s183 + $0xf0] sm:$0xff]
        %v253 = vld [vmem:[%s183 + $0xf8] sm:$0xff]
        %s254 = scalar_lea.vmem [#allocation2], 16
        %255 = vst [vmem:[%s254] sm:$0xff] %v222
        %256 = vst [vmem:[%s254 + $0x8] sm:$0xff] %v223
        %257 = vst [vmem:[%s254 + $0x10] sm:$0xff] %v224
        %258 = vst [vmem:[%s254 + $0x18] sm:$0xff] %v225
        %259 = vst [vmem:[%s254 + $0x20] sm:$0xff] %v226
        %260 = vst [vmem:[%s254 + $0x28] sm:$0xff] %v227
        %261 = vst [vmem:[%s254 + $0x30] sm:$0xff] %v228
        %262 = vst [vmem:[%s254 + $0x38] sm:$0xff] %v229
        %263 = vst [vmem:[%s254 + $0x40] sm:$0xff] %v230
        %264 = vst [vmem:[%s254 + $0x48] sm:$0xff] %v231
        %265 = vst [vmem:[%s254 + $0x50] sm:$0xff] %v232
        %266 = vst [vmem:[%s254 + $0x58] sm:$0xff] %v233
        %267 = vst [vmem:[%s254 + $0x60] sm:$0xff] %v234
        %268 = vst [vmem:[%s254 + $0x68] sm:$0xff] %v235
        %269 = vst [vmem:[%s254 + $0x70] sm:$0xff] %v236
        %270 = vst [vmem:[%s254 + $0x78] sm:$0xff] %v237
        %271 = vst [vmem:[%s254 + $0x80] sm:$0xff] %v238
        %272 = vst [vmem:[%s254 + $0x88] sm:$0xff] %v239
        %273 = vst [vmem:[%s254 + $0x90] sm:$0xff] %v240
        %274 = vst [vmem:[%s254 + $0x98] sm:$0xff] %v241
        %275 = vst [vmem:[%s254 + $0xa0] sm:$0xff] %v242
        %276 = vst [vmem:[%s254 + $0xa8] sm:$0xff] %v243
        %277 = vst [vmem:[%s254 + $0xb0] sm:$0xff] %v244
        %278 = vst [vmem:[%s254 + $0xb8] sm:$0xff] %v245
        %279 = vst [vmem:[%s254 + $0xc0] sm:$0xff] %v246
        %280 = vst [vmem:[%s254 + $0xc8] sm:$0xff] %v247
        %281 = vst [vmem:[%s254 + $0xd0] sm:$0xff] %v248
        %282 = vst [vmem:[%s254 + $0xd8] sm:$0xff] %v249
        %283 = vst [vmem:[%s254 + $0xe0] sm:$0xff] %v250
        %284 = vst [vmem:[%s254 + $0xe8] sm:$0xff] %v251
        %285 = vst [vmem:[%s254 + $0xf0] sm:$0xff] %v252
        %286 = vst [vmem:[%s254 + $0xf8] sm:$0xff] %v253
        %v287 = vld [vmem:[#allocation2] sm:$0xff]
        %v288 = vld [vmem:[#allocation2 + $0x8] sm:$0xff]
        %v289 = vld [vmem:[#allocation2 + $0x10] sm:$0xff]
        %v290 = vld [vmem:[#allocation2 + $0x18] sm:$0xff]
        %v291 = vld [vmem:[#allocation2 + $0x20] sm:$0xff]
        %v292 = vld [vmem:[#allocation2 + $0x28] sm:$0xff]
        %v293 = vld [vmem:[#allocation2 + $0x30] sm:$0xff]
        %v294 = vld [vmem:[#allocation2 + $0x38] sm:$0xff]
        %v295 = vld [vmem:[#allocation2 + $0x40] sm:$0xff]
        %v296 = vld [vmem:[#allocation2 + $0x48] sm:$0xff]
        %v297 = vld [vmem:[#allocation2 + $0x50] sm:$0xff]
        %v298 = vld [vmem:[#allocation2 + $0x58] sm:$0xff]
        %v299 = vld [vmem:[#allocation2 + $0x60] sm:$0xff]
        %v300 = vld [vmem:[#allocation2 + $0x68] sm:$0xff]
        %v301 = vld [vmem:[#allocation2 + $0x70] sm:$0xff]
        %v302 = vld [vmem:[#allocation2 + $0x78] sm:$0xff]
        %v303 = vld [vmem:[#allocation2 + $0x80] sm:$0xff]
        %v304 = vld [vmem:[#allocation2 + $0x88] sm:$0xff]
        %v305 = vld [vmem:[#allocation2 + $0x90] sm:$0xff]
        %v306 = vld [vmem:[#allocation2 + $0x98] sm:$0xff]
        %v307 = vld [vmem:[#allocation2 + $0xa0] sm:$0xff]
        %v308 = vld [vmem:[#allocation2 + $0xa8] sm:$0xff]
        %v309 = vld [vmem:[#allocation2 + $0xb0] sm:$0xff]
        %v310 = vld [vmem:[#allocation2 + $0xb8] sm:$0xff]
        %v311 = vld [vmem:[#allocation2 + $0xc0] sm:$0xff]
        %v312 = vld [vmem:[#allocation2 + $0xc8] sm:$0xff]
        %v313 = vld [vmem:[#allocation2 + $0xd0] sm:$0xff]
        %v314 = vld [vmem:[#allocation2 + $0xd8] sm:$0xff]
        %v315 = vld [vmem:[#allocation2 + $0xe0] sm:$0xff]
        %v316 = vld [vmem:[#allocation2 + $0xe8] sm:$0xff]
        %v317 = vld [vmem:[#allocation2 + $0xf0] sm:$0xff]
        %v318 = vld [vmem:[#allocation2 + $0xf8] sm:$0xff]
        %v319 = vld [vmem:[#allocation6] sm:$0x1]
        %v320 = vperm.slane %v319, 0
        %v321 = vmul.f32 %v287, %v320
        %v322 = vmul.f32 %v288, %v320
        %v323 = vmul.f32 %v289, %v320
        %v324 = vmul.f32 %v290, %v320
        %v325 = vmul.f32 %v291, %v320
        %v326 = vmul.f32 %v292, %v320
        %v327 = vmul.f32 %v293, %v320
        %v328 = vmul.f32 %v294, %v320
        %v329 = vmul.f32 %v295, %v320
        %v330 = vmul.f32 %v296, %v320
        %v331 = vmul.f32 %v297, %v320
        %v332 = vmul.f32 %v298, %v320
        %v333 = vmul.f32 %v299, %v320
        %v334 = vmul.f32 %v300, %v320
        %v335 = vmul.f32 %v301, %v320
        %v336 = vmul.f32 %v302, %v320
        %v337 = vmul.f32 %v303, %v320
        %v338 = vmul.f32 %v304, %v320
        %v339 = vmul.f32 %v305, %v320
        %v340 = vmul.f32 %v306, %v320
        %v341 = vmul.f32 %v307, %v320
        %v342 = vmul.f32 %v308, %v320
        %v343 = vmul.f32 %v309, %v320
        %v344 = vmul.f32 %v310, %v320
        %v345 = vmul.f32 %v311, %v320
        %v346 = vmul.f32 %v312, %v320
        %v347 = vmul.f32 %v313, %v320
        %v348 = vmul.f32 %v314, %v320
        %v349 = vmul.f32 %v315, %v320
        %v350 = vmul.f32 %v316, %v320
        %v351 = vmul.f32 %v317, %v320
        %v352 = vmul.f32 %v318, %v320
        %v353 = vadd.f32 %v321, 0.0
        %v354 = vadd.f32 %v322, 0.0
        %v355 = vadd.f32 %v323, 0.0
        %v356 = vadd.f32 %v324, 0.0
        %v357 = vadd.f32 %v325, 0.0
        %v358 = vadd.f32 %v326, 0.0
        %v359 = vadd.f32 %v327, 0.0
        %v360 = vadd.f32 %v328, 0.0
        %v361 = vadd.f32 %v329, 0.0
        %v362 = vadd.f32 %v330, 0.0
        %v363 = vadd.f32 %v331, 0.0
        %v364 = vadd.f32 %v332, 0.0
        %v365 = vadd.f32 %v333, 0.0
        %v366 = vadd.f32 %v334, 0.0
        %v367 = vadd.f32 %v335, 0.0
        %v368 = vadd.f32 %v336, 0.0
        %v369 = vadd.f32 %v337, 0.0
        %v370 = vadd.f32 %v338, 0.0
        %v371 = vadd.f32 %v339, 0.0
        %v372 = vadd.f32 %v340, 0.0
        %v373 = vadd.f32 %v341, 0.0
        %v374 = vadd.f32 %v342, 0.0
        %v375 = vadd.f32 %v343, 0.0
        %v376 = vadd.f32 %v344, 0.0
        %v377 = vadd.f32 %v345, 0.0
        %v378 = vadd.f32 %v346, 0.0
        %v379 = vadd.f32 %v347, 0.0
        %v380 = vadd.f32 %v348, 0.0
        %v381 = vadd.f32 %v349, 0.0
        %v382 = vadd.f32 %v350, 0.0
        %v383 = vadd.f32 %v351, 0.0
        %v384 = vadd.f32 %v352, 0.0
        %v385 = vld [vmem:[%s254] sm:$0xff]
        %v386 = vld [vmem:[%s254 + $0x8] sm:$0xff]
        %v387 = vld [vmem:[%s254 + $0x10] sm:$0xff]
        %v388 = vld [vmem:[%s254 + $0x18] sm:$0xff]
        %v389 = vld [vmem:[%s254 + $0x20] sm:$0xff]
        %v390 = vld [vmem:[%s254 + $0x28] sm:$0xff]
        %v391 = vld [vmem:[%s254 + $0x30] sm:$0xff]
        %v392 = vld [vmem:[%s254 + $0x38] sm:$0xff]
        %v393 = vld [vmem:[%s254 + $0x40] sm:$0xff]
        %v394 = vld [vmem:[%s254 + $0x48] sm:$0xff]
        %v395 = vld [vmem:[%s254 + $0x50] sm:$0xff]
        %v396 = vld [vmem:[%s254 + $0x58] sm:$0xff]
        %v397 = vld [vmem:[%s254 + $0x60] sm:$0xff]
        %v398 = vld [vmem:[%s254 + $0x68] sm:$0xff]
        %v399 = vld [vmem:[%s254 + $0x70] sm:$0xff]
        %v400 = vld [vmem:[%s254 + $0x78] sm:$0xff]
        %v401 = vld [vmem:[%s254 + $0x80] sm:$0xff]
        %v402 = vld [vmem:[%s254 + $0x88] sm:$0xff]
        %v403 = vld [vmem:[%s254 + $0x90] sm:$0xff]
        %v404 = vld [vmem:[%s254 + $0x98] sm:$0xff]
        %v405 = vld [vmem:[%s254 + $0xa0] sm:$0xff]
        %v406 = vld [vmem:[%s254 + $0xa8] sm:$0xff]
        %v407 = vld [vmem:[%s254 + $0xb0] sm:$0xff]
        %v408 = vld [vmem:[%s254 + $0xb8] sm:$0xff]
        %v409 = vld [vmem:[%s254 + $0xc0] sm:$0xff]
        %v410 = vld [vmem:[%s254 + $0xc8] sm:$0xff]
        %v411 = vld [vmem:[%s254 + $0xd0] sm:$0xff]
        %v412 = vld [vmem:[%s254 + $0xd8] sm:$0xff]
        %v413 = vld [vmem:[%s254 + $0xe0] sm:$0xff]
        %v414 = vld [vmem:[%s254 + $0xe8] sm:$0xff]
        %v415 = vld [vmem:[%s254 + $0xf0] sm:$0xff]
        %v416 = vld [vmem:[%s254 + $0xf8] sm:$0xff]
        %v417 = vld [vmem:[#allocation6 + $0x1] sm:$0x1]
        %v418 = vperm.slane %v417, 0
        %v419 = vmul.f32 %v385, %v418
        %v420 = vmul.f32 %v386, %v418
        %v421 = vmul.f32 %v387, %v418
        %v422 = vmul.f32 %v388, %v418
        %v423 = vmul.f32 %v389, %v418
        %v424 = vmul.f32 %v390, %v418
        %v425 = vmul.f32 %v391, %v418
        %v426 = vmul.f32 %v392, %v418
        %v427 = vmul.f32 %v393, %v418
        %v428 = vmul.f32 %v394, %v418
        %v429 = vmul.f32 %v395, %v418
        %v430 = vmul.f32 %v396, %v418
        %v431 = vmul.f32 %v397, %v418
        %v432 = vmul.f32 %v398, %v418
        %v433 = vmul.f32 %v399, %v418
        %v434 = vmul.f32 %v400, %v418
        %v435 = vmul.f32 %v401, %v418
        %v436 = vmul.f32 %v402, %v418
        %v437 = vmul.f32 %v403, %v418
        %v438 = vmul.f32 %v404, %v418
        %v439 = vmul.f32 %v405, %v418
        %v440 = vmul.f32 %v406, %v418
        %v441 = vmul.f32 %v407, %v418
        %v442 = vmul.f32 %v408, %v418
        %v443 = vmul.f32 %v409, %v418
        %v444 = vmul.f32 %v410, %v418
        %v445 = vmul.f32 %v411, %v418
        %v446 = vmul.f32 %v412, %v418
        %v447 = vmul.f32 %v413, %v418
        %v448 = vmul.f32 %v414, %v418
        %v449 = vmul.f32 %v415, %v418
        %v450 = vmul.f32 %v416, %v418
        %v451 = vadd.f32 %v353, %v419
        %v452 = vadd.f32 %v354, %v420
        %v453 = vadd.f32 %v355, %v421
        %v454 = vadd.f32 %v356, %v422
        %v455 = vadd.f32 %v357, %v423
        %v456 = vadd.f32 %v358, %v424
        %v457 = vadd.f32 %v359, %v425
        %v458 = vadd.f32 %v360, %v426
        %v459 = vadd.f32 %v361, %v427
        %v460 = vadd.f32 %v362, %v428
        %v461 = vadd.f32 %v363, %v429
        %v462 = vadd.f32 %v364, %v430
        %v463 = vadd.f32 %v365, %v431
        %v464 = vadd.f32 %v366, %v432
        %v465 = vadd.f32 %v367, %v433
        %v466 = vadd.f32 %v368, %v434
        %v467 = vadd.f32 %v369, %v435
        %v468 = vadd.f32 %v370, %v436
        %v469 = vadd.f32 %v371, %v437
        %v470 = vadd.f32 %v372, %v438
        %v471 = vadd.f32 %v373, %v439
        %v472 = vadd.f32 %v374, %v440
        %v473 = vadd.f32 %v375, %v441
        %v474 = vadd.f32 %v376, %v442
        %v475 = vadd.f32 %v377, %v443
        %v476 = vadd.f32 %v378, %v444
        %v477 = vadd.f32 %v379, %v445
        %v478 = vadd.f32 %v380, %v446
        %v479 = vadd.f32 %v381, %v447
        %v480 = vadd.f32 %v382, %v448
        %v481 = vadd.f32 %v383, %v449
        %v482 = vadd.f32 %v384, %v450
        %s483 = scalar_lea.vmem [#allocation2], 32
        %v484 = vld [vmem:[%s483] sm:$0xff]
        %v485 = vld [vmem:[%s483 + $0x8] sm:$0xff]
        %v486 = vld [vmem:[%s483 + $0x10] sm:$0xff]
        %v487 = vld [vmem:[%s483 + $0x18] sm:$0xff]
        %v488 = vld [vmem:[%s483 + $0x20] sm:$0xff]
        %v489 = vld [vmem:[%s483 + $0x28] sm:$0xff]
        %v490 = vld [vmem:[%s483 + $0x30] sm:$0xff]
        %v491 = vld [vmem:[%s483 + $0x38] sm:$0xff]
        %v492 = vld [vmem:[%s483 + $0x40] sm:$0xff]
        %v493 = vld [vmem:[%s483 + $0x48] sm:$0xff]
        %v494 = vld [vmem:[%s483 + $0x50] sm:$0xff]
        %v495 = vld [vmem:[%s483 + $0x58] sm:$0xff]
        %v496 = vld [vmem:[%s483 + $0x60] sm:$0xff]
        %v497 = vld [vmem:[%s483 + $0x68] sm:$0xff]
        %v498 = vld [vmem:[%s483 + $0x70] sm:$0xff]
        %v499 = vld [vmem:[%s483 + $0x78] sm:$0xff]
        %v500 = vld [vmem:[%s483 + $0x80] sm:$0xff]
        %v501 = vld [vmem:[%s483 + $0x88] sm:$0xff]
        %v502 = vld [vmem:[%s483 + $0x90] sm:$0xff]
        %v503 = vld [vmem:[%s483 + $0x98] sm:$0xff]
        %v504 = vld [vmem:[%s483 + $0xa0] sm:$0xff]
        %v505 = vld [vmem:[%s483 + $0xa8] sm:$0xff]
        %v506 = vld [vmem:[%s483 + $0xb0] sm:$0xff]
        %v507 = vld [vmem:[%s483 + $0xb8] sm:$0xff]
        %v508 = vld [vmem:[%s483 + $0xc0] sm:$0xff]
        %v509 = vld [vmem:[%s483 + $0xc8] sm:$0xff]
        %v510 = vld [vmem:[%s483 + $0xd0] sm:$0xff]
        %v511 = vld [vmem:[%s483 + $0xd8] sm:$0xff]
        %v512 = vld [vmem:[%s483 + $0xe0] sm:$0xff]
        %v513 = vld [vmem:[%s483 + $0xe8] sm:$0xff]
        %v514 = vld [vmem:[%s483 + $0xf0] sm:$0xff]
        %v515 = vld [vmem:[%s483 + $0xf8] sm:$0xff]
        %v516 = vld [vmem:[#allocation6 + $0x2] sm:$0x1]
        %v517 = vperm.slane %v516, 0
        %v518 = vmul.f32 %v484, %v517
        %v519 = vmul.f32 %v485, %v517
        %v520 = vmul.f32 %v486, %v517
        %v521 = vmul.f32 %v487, %v517
        %v522 = vmul.f32 %v488, %v517
        %v523 = vmul.f32 %v489, %v517
        %v524 = vmul.f32 %v490, %v517
        %v525 = vmul.f32 %v491, %v517
        %v526 = vmul.f32 %v492, %v517
        %v527 = vmul.f32 %v493, %v517
        %v528 = vmul.f32 %v494, %v517
        %v529 = vmul.f32 %v495, %v517
        %v530 = vmul.f32 %v496, %v517
        %v531 = vmul.f32 %v497, %v517
        %v532 = vmul.f32 %v498, %v517
        %v533 = vmul.f32 %v499, %v517
        %v534 = vmul.f32 %v500, %v517
        %v535 = vmul.f32 %v501, %v517
        %v536 = vmul.f32 %v502, %v517
        %v537 = vmul.f32 %v503, %v517
        %v538 = vmul.f32 %v504, %v517
        %v539 = vmul.f32 %v505, %v517
        %v540 = vmul.f32 %v506, %v517
        %v541 = vmul.f32 %v507, %v517
        %v542 = vmul.f32 %v508, %v517
        %v543 = vmul.f32 %v509, %v517
        %v544 = vmul.f32 %v510, %v517
        %v545 = vmul.f32 %v511, %v517
        %v546 = vmul.f32 %v512, %v517
        %v547 = vmul.f32 %v513, %v517
        %v548 = vmul.f32 %v514, %v517
        %v549 = vmul.f32 %v515, %v517
        %v550 = vadd.f32 %v451, %v518
        %v551 = vadd.f32 %v452, %v519
        %v552 = vadd.f32 %v453, %v520
        %v553 = vadd.f32 %v454, %v521
        %v554 = vadd.f32 %v455, %v522
        %v555 = vadd.f32 %v456, %v523
        %v556 = vadd.f32 %v457, %v524
        %v557 = vadd.f32 %v458, %v525
        %v558 = vadd.f32 %v459, %v526
        %v559 = vadd.f32 %v460, %v527
        %v560 = vadd.f32 %v461, %v528
        %v561 = vadd.f32 %v462, %v529
        %v562 = vadd.f32 %v463, %v530
        %v563 = vadd.f32 %v464, %v531
        %v564 = vadd.f32 %v465, %v532
        %v565 = vadd.f32 %v466, %v533
        %v566 = vadd.f32 %v467, %v534
        %v567 = vadd.f32 %v468, %v535
        %v568 = vadd.f32 %v469, %v536
        %v569 = vadd.f32 %v470, %v537
        %v570 = vadd.f32 %v471, %v538
        %v571 = vadd.f32 %v472, %v539
        %v572 = vadd.f32 %v473, %v540
        %v573 = vadd.f32 %v474, %v541
        %v574 = vadd.f32 %v475, %v542
        %v575 = vadd.f32 %v476, %v543
        %v576 = vadd.f32 %v477, %v544
        %v577 = vadd.f32 %v478, %v545
        %v578 = vadd.f32 %v479, %v546
        %v579 = vadd.f32 %v480, %v547
        %v580 = vadd.f32 %v481, %v548
        %v581 = vadd.f32 %v482, %v549
        %582 = vst [vmem:[%s209] sm:$0xff] %v550
        %583 = vst [vmem:[%s209 + $0x8] sm:$0xff] %v551
        %584 = vst [vmem:[%s209 + $0x10] sm:$0xff] %v552
        %585 = vst [vmem:[%s209 + $0x18] sm:$0xff] %v553
        %586 = vst [vmem:[%s209 + $0x20] sm:$0xff] %v554
        %587 = vst [vmem:[%s209 + $0x28] sm:$0xff] %v555
        %588 = vst [vmem:[%s209 + $0x30] sm:$0xff] %v556
        %589 = vst [vmem:[%s209 + $0x38] sm:$0xff] %v557
        %590 = vst [vmem:[%s209 + $0x40] sm:$0xff] %v558
        %591 = vst [vmem:[%s209 + $0x48] sm:$0xff] %v559
        %592 = vst [vmem:[%s209 + $0x50] sm:$0xff] %v560
        %593 = vst [vmem:[%s209 + $0x58] sm:$0xff] %v561
        %594 = vst [vmem:[%s209 + $0x60] sm:$0xff] %v562
        %595 = vst [vmem:[%s209 + $0x68] sm:$0xff] %v563
        %596 = vst [vmem:[%s209 + $0x70] sm:$0xff] %v564
        %597 = vst [vmem:[%s209 + $0x78] sm:$0xff] %v565
        %598 = vst [vmem:[%s209 + $0x80] sm:$0xff] %v566
        %599 = vst [vmem:[%s209 + $0x88] sm:$0xff] %v567
        %600 = vst [vmem:[%s209 + $0x90] sm:$0xff] %v568
        %601 = vst [vmem:[%s209 + $0x98] sm:$0xff] %v569
        %602 = vst [vmem:[%s209 + $0xa0] sm:$0xff] %v570
        %603 = vst [vmem:[%s209 + $0xa8] sm:$0xff] %v571
        %604 = vst [vmem:[%s209 + $0xb0] sm:$0xff] %v572
        %605 = vst [vmem:[%s209 + $0xb8] sm:$0xff] %v573
        %606 = vst [vmem:[%s209 + $0xc0] sm:$0xff] %v574
        %607 = vst [vmem:[%s209 + $0xc8] sm:$0xff] %v575
        %608 = vst [vmem:[%s209 + $0xd0] sm:$0xff] %v576
        %609 = vst [vmem:[%s209 + $0xd8] sm:$0xff] %v577
        %610 = vst [vmem:[%s209 + $0xe0] sm:$0xff] %v578
        %611 = vst [vmem:[%s209 + $0xe8] sm:$0xff] %v579
        %612 = vst [vmem:[%s209 + $0xf0] sm:$0xff] %v580
        %613 = vst [vmem:[%s209 + $0xf8] sm:$0xff] %v581
        %v614 = vadd.f32 %v550, %v551
        %v615 = vadd.f32 %v614, %v552
        %v616 = vadd.f32 %v615, %v553
        %v617 = vadd.f32 %v616, %v554
        %v618 = vadd.f32 %v617, %v555
        %v619 = vadd.f32 %v618, %v556
        %v620 = vadd.f32 %v619, %v557
        %v621 = vadd.f32 %v620, %v558
        %v622 = vadd.f32 %v621, %v559
        %v623 = vadd.f32 %v622, %v560
        %v624 = vadd.f32 %v623, %v561
        %v625 = vadd.f32 %v624, %v562
        %v626 = vadd.f32 %v625, %v563
        %v627 = vadd.f32 %v626, %v564
        %v628 = vadd.f32 %v627, %v565
        %v629 = vadd.f32 %v628, %v566
        %v630 = vadd.f32 %v629, %v567
        %v631 = vadd.f32 %v630, %v568
        %v632 = vadd.f32 %v631, %v569
        %v633 = vadd.f32 %v632, %v570
        %v634 = vadd.f32 %v633, %v571
        %v635 = vadd.f32 %v634, %v572
        %v636 = vadd.f32 %v635, %v573
        %v637 = vadd.f32 %v636, %v574
        %v638 = vadd.f32 %v637, %v575
        %v639 = vadd.f32 %v638, %v576
        %v640 = vadd.f32 %v639, %v577
        %v641 = vadd.f32 %v640, %v578
        %v642 = vadd.f32 %v641, %v579
        %v643 = vadd.f32 %v642, %v580
        %v644 = vadd.f32 %v643, %v581
        %v645 = vrot.slane %v644, 4
        %v646 = vadd.f32 %v644, %v645
        %v647 = vrot.slane %v646, 2
        %v648 = vadd.f32 %v646, %v647
        %v649 = vrot.slane %v648, 1
        %v650 = vadd.f32 %v648, %v649
        %v651 = vmul.f32 %v550, %v550
        %v652 = vmul.f32 %v551, %v551
        %v653 = vmul.f32 %v552, %v552
        %v654 = vmul.f32 %v553, %v553
        %v655 = vmul.f32 %v554, %v554
        %v656 = vmul.f32 %v555, %v555
        %v657 = vmul.f32 %v556, %v556
        %v658 = vmul.f32 %v557, %v557
        %v659 = vmul.f32 %v558, %v558
        %v660 = vmul.f32 %v559, %v559
        %v661 = vmul.f32 %v560, %v560
        %v662 = vmul.f32 %v561, %v561
        %v663 = vmul.f32 %v562, %v562
        %v664 = vmul.f32 %v563, %v563
        %v665 = vmul.f32 %v564, %v564
        %v666 = vmul.f32 %v565, %v565
        %v667 = vmul.f32 %v566, %v566
        %v668 = vmul.f32 %v567, %v567
        %v669 = vmul.f32 %v568, %v568
        %v670 = vmul.f32 %v569, %v569
        %v671 = vmul.f32 %v570, %v570
        %v672 = vmul.f32 %v571, %v571
        %v673 = vmul.f32 %v572, %v572
        %v674 = vmul.f32 %v573, %v573
        %v675 = vmul.f32 %v574, %v574
        %v676 = vmul.f32 %v575, %v575
        %v677 = vmul.f32 %v576, %v576
        %v678 = vmul.f32 %v577, %v577
        %v679 = vmul.f32 %v578, %v578
        %v680 = vmul.f32 %v579, %v579
        %v681 = vmul.f32 %v580, %v580
        %v682 = vmul.f32 %v581, %v581
        %v683 = vadd.f32 %v651, %v652
        %v684 = vadd.f32 %v683, %v653
        %v685 = vadd.f32 %v684, %v654
        %v686 = vadd.f32 %v685, %v655
        %v687 = vadd.f32 %v686, %v656
        %v688 = vadd.f32 %v687, %v657
        %v689 = vadd.f32 %v688, %v658
        %v690 = vadd.f32 %v689, %v659
        %v691 = vadd.f32 %v690, %v660
        %v692 = vadd.f32 %v691, %v661
        %v693 = vadd.f32 %v692, %v662
        %v694 = vadd.f32 %v693, %v663
        %v695 = vadd.f32 %v694, %v664
        %v696 = vadd.f32 %v695, %v665
        %v697 = vadd.f32 %v696, %v666
        %v698 = vadd.f32 %v697, %v667
        %v699 = vadd.f32 %v698, %v668
        %v700 = vadd.f32 %v699, %v669
        %v701 = vadd.f32 %v700, %v670
        %v702 = vadd.f32 %v701, %v671
        %v703 = vadd.f32 %v702, %v672
        %v704 = vadd.f32 %v703, %v673
        %v705 = vadd.f32 %v704, %v674
        %v706 = vadd.f32 %v705, %v675
        %v707 = vadd.f32 %v706, %v676
        %v708 = vadd.f32 %v707, %v677
        %v709 = vadd.f32 %v708, %v678
        %v710 = vadd.f32 %v709, %v679
        %v711 = vadd.f32 %v710, %v680
        %v712 = vadd.f32 %v711, %v681
        %v713 = vadd.f32 %v712, %v682
        %v714 = vrot.slane %v713, 4
        %v715 = vadd.f32 %v713, %v714
        %v716 = vrot.slane %v715, 2
        %v717 = vadd.f32 %v715, %v716
        %v718 = vrot.slane %v717, 1
        %v719 = vadd.f32 %v717, %v718
        %vm720 = vcmask 1040384
        %v721 = vsel %vm720, %v650, %v719
        %722 = vst [vmem:[%s216] sm:$0x3] %v721
        %s723 = sand.u32 %s80, 1
        %s724 = scalar_lea.sflag [#allocation5], %s723
        %s725 = sand.u32 %s80, 1
        %s726 = smul.addr %s725, 256
        %s727 = scalar_lea.vmem [#allocation8], %s726
        %s728 = sand.u32 %s106, 1
        %s729 = scalar_lea.sflag [#allocation10], %s728
        %s730 = sand.u32 %s106, 1
        %s731 = smul.addr %s730, 2
        %s732 = scalar_lea.vmem [#allocation9], %s731
        // Predicated region
        $region37: #{tpu_custom_call.1} parent=27 // pred_check
          %p733 = pneg %p90
        $region38: #{tpu_custom_call.1} parent=27 // pred_check_branch
          %735 = sbr.rel (%p733) target = $region40
        $region39: #{tpu_custom_call.1} parent=27 // pred_region
          %737 = vsyncadd %s724, 0
          %s738 = smul.addr %s25, 32
          %s739 = smul.addr %s738, 8
          %s740 = scalar_lea.hbm %s2, %s739
          %s741 = sshll.u32 %s727, 4
          %s742 = int_to_ptr.vmem [resolvable:$true] %s741
          %s743 = sshll.u32 %s740, 4
          %s744 = int_to_ptr.hbm [resolvable:$true] %s743
          %749 = dma.vmem_to_hbm [thread:$0]  %s742, 4096, %s744, %s724, 128, 128, 8
        $region40: #{tpu_custom_call.1} parent=27 // pred_fallthru
          _
        // Predicated region
        $region41: #{tpu_custom_call.1} parent=27 // pred_check
          %p750 = pneg %p116
        $region42: #{tpu_custom_call.1} parent=27 // pred_check_branch
          %752 = sbr.rel (%p750) target = $region44
        $region43: #{tpu_custom_call.1} parent=27 // pred_region
          %754 = vsyncadd %s729, 0
          %s755 = smul.addr %s25, 2
          %s756 = scalar_lea.hbm %s3, %s755
          %s758 = sshll.u32 %s732, 4
          %s759 = int_to_ptr.vmem [resolvable:$true] %s758
          %s760 = sshll.u32 %s756, 4
          %s761 = int_to_ptr.hbm [resolvable:$true] %s760
          %763 = dma.vmem_to_hbm [thread:$0]  %s759, 32, %s761, %s729
        $region44: #{tpu_custom_call.1} parent=27 // pred_fallthru
          _
      $region28: #{tpu_custom_call.1} parent=5 // pred_fallthru
        _
      %p764 = scmp.le.s32.totalorder 2, %s20
      // Predicated region
      $region45: #{tpu_custom_call.1} parent=5 // pred_check
        %p765 = pneg %p764
      $region46: #{tpu_custom_call.1} parent=5 // pred_check_branch
        %767 = sbr.rel (%p765) target = $region48
      $region47: #{tpu_custom_call.1} parent=5 // pred_region
        %s768 = ssub.s32 %s20, 2
        // Predicated region
        $region49: #{tpu_custom_call.1} parent=47 // pred_check
          %p769 = pneg %p96
        $region50: #{tpu_custom_call.1} parent=47 // pred_check_branch
          %771 = sbr.rel (%p769) target = $region52
        $region51: #{tpu_custom_call.1} parent=47 // pred_region
          %s772 = sand.u32 %s81, 1
          %s773 = scalar_lea.sflag [#allocation5], %s772
          %s774 = sand.u32 %s81, 1
          %s775 = smul.addr %s774, 256
          %s776 = scalar_lea.vmem [#allocation8], %s775
          %778 = dma.done %s773, 4096
        $region52: #{tpu_custom_call.1} parent=47 // pred_fallthru
          _
        // Predicated region
        $region53: #{tpu_custom_call.1} parent=47 // pred_check
          %p779 = pneg %p122
        $region54: #{tpu_custom_call.1} parent=47 // pred_check_branch
          %781 = sbr.rel (%p779) target = $region56
        $region55: #{tpu_custom_call.1} parent=47 // pred_region
          %s782 = sand.u32 %s107, 1
          %s783 = scalar_lea.sflag [#allocation10], %s782
          %s784 = sand.u32 %s107, 1
          %s785 = smul.addr %s784, 2
          %s786 = scalar_lea.vmem [#allocation9], %s785
          %788 = dma.done %s783, 32
        $region56: #{tpu_custom_call.1} parent=47 // pred_fallthru
          _
      $region48: #{tpu_custom_call.1} parent=5 // pred_fallthru
        _
    $region6: #{tpu_custom_call.1} parent=1 // loop_footer
      %s24 = sadd.s32 1, %s20
    $region7: #{tpu_custom_call.1} parent=1 // loop_footer_branch
      %19 = sbr.rel target = $region3
    $region8: #{tpu_custom_call.1} parent=1 // loop_exit
      _
    %789 = vsyncpa [#allocation4], 1
    %s790 = scalar_lea.sflag [#allocation4], 1
    %791 = vsyncpa %s790, 1
    %792 = vsyncpa [#allocation7], 1
    %793 = vsyncpa [#allocation5], 1
    %s794 = scalar_lea.sflag [#allocation5], 1
    %795 = vsyncpa %s794, 1
    %796 = vsyncpa [#allocation10], 1
    %s797 = scalar_lea.sflag [#allocation10], 1
    %798 = vsyncpa %s797, 1

</llo_original>
